<compile_context>
chip_gen: v6e
topology: v6e:2x2x1
jax: 0.10.0
libtpu: 0.0.40
codegen_flags: <defaults>
</compile_context>

<pallas_src>
import math
from functools import partial

import jax
import jax.numpy as jnp
from jax import lax
from jax.experimental import pallas as pl
from jax.experimental.pallas import tpu as pltpu

NEG = -1e9
LN_EPS = 1e-12
TAG_PAD = 8                       # CRF tag axis padded to a sublane multiple


# ---------------------------------------------------------------------------
# Generation-dependent VMEM budget (v5e/v6e: 128 MiB/TC -> ~96 MiB, v7x: 64 -> 48)
# ---------------------------------------------------------------------------

def _detect_vmem_limit():
    try:
        cap = int(pltpu.get_tpu_info().vmem_capacity_bytes)
        return max(32 * 1024 * 1024, min(cap * 3 // 4, 100 * 1024 * 1024))
    except Exception:
        return 48 * 1024 * 1024


_VMEM_LIMIT = _detect_vmem_limit()


def _mosaic_params(semantics):
    return pltpu.CompilerParams(dimension_semantics=semantics,
                                vmem_limit_bytes=_VMEM_LIMIT)


def _layernorm(x, g, b):
    mu = jnp.mean(x, axis=-1, keepdims=True)
    var = jnp.mean(jnp.square(x - mu), axis=-1, keepdims=True)
    return (x - mu) * lax.rsqrt(var + LN_EPS) * g + b


def _gelu_new(x):
    c = math.sqrt(2.0 / math.pi)
    return 0.5 * x * (1.0 + jnp.tanh(c * (x + 0.044715 * x * x * x)))


def _seq_tile(S, H):
    """Largest multiple-of-8 tile dividing S that fits the VMEM budget (no >=2-step rule)."""
    budget = _VMEM_LIMIT // 8
    for t in (2048, 1024, 512, 256, 128, 64, 32, 16, 8):
        if t <= S and S % t == 0 and t * max(H, 128) * 4 * 8 <= budget:
            return t
    return S


# ---------------------------------------------------------------------------
# Kernel 1: embedding sum + embedding LayerNorm (grid over (batch, seq-tile)).
# Positional table is NOT broadcast/materialized; its index_map ignores batch.
# ---------------------------------------------------------------------------

def _embed_ln_kernel(w_ref, t_ref, p_ref, g_ref, b_ref, o_ref):
    x = w_ref[0] + t_ref[0] + p_ref[...]
    o_ref[0] = _layernorm(x, g_ref[...], b_ref[...])


def embed_ln(we, te, pos, g, b):
    B, S, H = we.shape
    ts = _seq_tile(S, H)
    tok = pl.BlockSpec((1, ts, H), lambda bi, si: (bi, si, 0))
    return pl.pallas_call(
        _embed_ln_kernel,
        grid=(B, S // ts),
        out_shape=jax.ShapeDtypeStruct((B, S, H), jnp.float32),
        in_specs=[tok, tok,
                  pl.BlockSpec((ts, H), lambda bi, si: (si, 0)),
                  pl.BlockSpec((1, H), lambda bi, si: (0, 0)),
                  pl.BlockSpec((1, H), lambda bi, si: (0, 0))],
        out_specs=tok,
        compiler_params=_mosaic_params(("parallel", "parallel")),
    )(we, te, pos, g, b)


# ---------------------------------------------------------------------------
# Kernel 2: fused encoder layer.  grid=(B, nh); head axis accumulates the
# output-projection partials in a VMEM scratch, then the last head finishes
# residual+LN1+FFN+LN2 (+classifier for the last layer) entirely in VMEM.
# ---------------------------------------------------------------------------

def _layer_kernel(x_ref, m_ref, wq_ref, wk_ref, wv_ref, bq_ref, bk_ref, bv_ref,
                  wo_ref, bo_ref, g1_ref, be1_ref, w1_ref, b1_ref, w2_ref, b2_ref,
                  g2_ref, be2_ref, *rest, nh, scale, has_cls):
    if has_cls:
        wc_ref, bc_ref, o_ref, acc_ref = rest
    else:
        o_ref, acc_ref = rest

    h = pl.program_id(1)

    @pl.when(h == 0)
    def _init():
        acc_ref[...] = jnp.zeros_like(acc_ref)

    x = x_ref[0]                                        # [S, H] f32 (layer input)
    xb = x.astype(jnp.bfloat16)

    q = jnp.dot(xb, wq_ref[0], preferred_element_type=jnp.float32) + bq_ref[0]   # [S, dh]
    k = jnp.dot(xb, wk_ref[0], preferred_element_type=jnp.float32) + bk_ref[0]
    v = jnp.dot(xb, wv_ref[0], preferred_element_type=jnp.float32) + bv_ref[0]

    s = lax.dot_general(q.astype(jnp.bfloat16), k.astype(jnp.bfloat16),
                        (((1,), (1,)), ((), ())),
                        preferred_element_type=jnp.float32) * scale + m_ref[...]  # [S, S]
    s = s - jnp.max(s, axis=-1, keepdims=True)
    p = jnp.exp(s)
    p = p / jnp.sum(p, axis=-1, keepdims=True)          # exact softmax (no approx reciprocal)
    ctx = jnp.dot(p.astype(jnp.bfloat16), v.astype(jnp.bfloat16),
                  preferred_element_type=jnp.float32)   # [S, dh]

    # per-head output-projection partial, accumulated (replaces concat + single big dot)
    acc_ref[...] += jnp.dot(ctx.astype(jnp.bfloat16), wo_ref[0],
                            preferred_element_type=jnp.float32)                  # [S, H]

    @pl.when(h == nh - 1)
    def _finish():
        attn = acc_ref[...] + bo_ref[...]
        y = _layernorm(x + attn, g1_ref[...], be1_ref[...])                      # post-LN1
        hdn = jnp.dot(y.astype(jnp.bfloat16), w1_ref[...],
                      preferred_element_type=jnp.float32) + b1_ref[...]
        hdn = _gelu_new(hdn)
        z = jnp.dot(hdn.astype(jnp.bfloat16), w2_ref[...],
                    preferred_element_type=jnp.float32) + b2_ref[...]
        z = _layernorm(y + z, g2_ref[...], be2_ref[...])                         # post-LN2
        if has_cls:
            o_ref[0] = jnp.dot(z.astype(jnp.bfloat16), wc_ref[...],
                               preferred_element_type=jnp.float32) + bc_ref[...]
        else:
            o_ref[0] = z


def layer_block(x3, add_mask, lyr, *, nh, cls=None):
    B, S, H = x3.shape
    dh = H // nh
    I = lyr["w1"].shape[1]
    out_dim = cls[0].shape[1] if cls is not None else H

    def const(shape):
        return pl.BlockSpec(shape, lambda b, h: (0, 0))

    def head(shape):
        return pl.BlockSpec(shape, lambda b, h: (h, 0, 0))

    in_specs = [
        pl.BlockSpec((1, S, H), lambda b, h: (b, 0, 0)),     # x
        pl.BlockSpec((1, S), lambda b, h: (b, 0)),           # additive key mask
        head((1, H, dh)), head((1, H, dh)), head((1, H, dh)),   # wq, wk, wv
        head((1, 1, dh)), head((1, 1, dh)), head((1, 1, dh)),   # bq, bk, bv
        head((1, dh, H)),                                     # wo
        const((1, H)),                                        # bo
        const((1, H)), const((1, H)),                         # ln1 gamma/beta
        const((H, I)), const((1, I)),                         # w1, b1
        const((I, H)), const((1, H)),                         # w2, b2
        const((1, H)), const((1, H)),                         # ln2 gamma/beta
    ]
    args = [x3, add_mask, lyr["wq3"], lyr["wk3"], lyr["wv3"],
            lyr["bq3"], lyr["bk3"], lyr["bv3"], lyr["wo3"], lyr["bo"],
            lyr["ln1_g"], lyr["ln1_b"], lyr["w1"], lyr["b1"],
            lyr["w2"], lyr["b2"], lyr["ln2_g"], lyr["ln2_b"]]
    if cls is not None:
        wc, bc = cls
        in_specs += [const((H, out_dim)), const((1, out_dim))]
        args += [wc, bc]

    return pl.pallas_call(
        partial(_layer_kernel, nh=nh, scale=1.0 / math.sqrt(dh), has_cls=cls is not None),
        grid=(B, nh),
        out_shape=jax.ShapeDtypeStruct((B, S, out_dim), jnp.float32),
        in_specs=in_specs,
        out_specs=pl.BlockSpec((1, S, out_dim), lambda b, h: (b, 0, 0)),
        scratch_shapes=[pltpu.VMEM((S, H), jnp.float32)],
        compiler_params=_mosaic_params(("parallel", "arbitrary")),
    )(*args)


# ---------------------------------------------------------------------------
# Kernel 3: CRF negative mean log-likelihood (torchcrf semantics, batch_first).
# Batch on the LANE axis: emissions [L, T, B], alpha [T, B]; gold one-hot built
# in-kernel from int32 labels.  lax.fori_loop over time (dynamic leading index).
# ---------------------------------------------------------------------------

def _crf_nll_kernel(em_ref, lab_ref, mk_ref, st_ref, en_ref, tr_ref, o_ref):
    L, T, B = em_ref.shape
    st = st_ref[...]                                    # [T, 1]
    en = en_ref[...]                                    # [T, 1]
    tr3 = tr_ref[...][:, :, None]                       # [T, T, 1] hoisted broadcast
    tag_iota = lax.broadcasted_iota(jnp.int32, (T, B), 0)

    def onehot(i):
        return (lab_ref[i] == tag_iota).astype(jnp.float32)   # [1,B] vs [T,B] -> [T,B]

    oh0 = onehot(0)                                     # [T, B]
    e0 = em_ref[0]                                      # [T, B]
    alpha0 = st + e0                                    # forward scores [T, B]
    num0 = jnp.sum(oh0 * alpha0, axis=0, keepdims=True)  # gold path score [1, B]

    def body(i, carry):
        num, alpha, last_oh = carry
        e_i = em_ref[i]                                 # [T, B]
        m_i = mk_ref[i]                                 # [1, B]
        oh_i = onehot(i)                                # [T, B]
        # gold-path transition from previous gold tag (VPU weighted sum, no MXU gather)
        trans_prev = jnp.sum(last_oh[:, None, :] * tr3, axis=0)          # [T, B]
        step = jnp.sum(oh_i * (trans_prev + e_i), axis=0, keepdims=True)  # [1, B]
        num = num + step * m_i
        # forward algorithm: logsumexp over previous tag (reduction over a major axis)
        z = alpha[:, None, :] + tr3                                       # [T, T, B]
        mx = jnp.max(z, axis=0)                                           # [T, B]
        nxt = mx + jnp.log(jnp.sum(jnp.exp(z - mx[None, :, :]), axis=0)) + e_i
        take = m_i > 0.0
        alpha = jnp.where(take, nxt, alpha)
        last_oh = jnp.where(take, oh_i, last_oh)
        return num, alpha, last_oh

    num, alpha, last_oh = lax.fori_loop(1, L, body, (num0, alpha0, oh0),
                                        unroll=(L <= 16))
    num = num + jnp.sum(last_oh * en, axis=0, keepdims=True)
    fin = alpha + en                                    # [T, B]
    mx = jnp.max(fin, axis=0, keepdims=True)            # [1, B]
    logz = mx + jnp.log(jnp.sum(jnp.exp(fin - mx), axis=0, keepdims=True))
    o_ref[...] = jnp.mean(logz - num).reshape(1, 1)     # reduction='mean' over batch


def crf_nll(emissions, tags, mask_f, start, end, trans):
    """emissions: [B, L, TAG_PAD] (pad tag columns already carry -1e9 classifier bias)."""
    B, L, Tp = emissions.shape
    T = start.shape[0]
    st = jnp.pad(start, (0, Tp - T), constant_values=NEG).reshape(Tp, 1)
    en = jnp.pad(end, (0, Tp - T), constant_values=NEG).reshape(Tp, 1)
    tr = jnp.pad(trans, ((0, Tp - T), (0, Tp - T)), constant_values=NEG)
    em = jnp.transpose(emissions, (1, 2, 0))                      # [L, Tp, B] (batch on lanes)
    lab = jnp.transpose(tags, (1, 0)).reshape(L, 1, B).astype(jnp.int32)
    mk = jnp.transpose(mask_f, (1, 0)).reshape(L, 1, B)
    out = pl.pallas_call(
        _crf_nll_kernel,
        out_shape=jax.ShapeDtypeStruct((1, 1), jnp.float32),
        in_specs=[pl.BlockSpec(memory_space=pltpu.MemorySpace.VMEM)] * 6,
        out_specs=pl.BlockSpec(memory_space=pltpu.MemorySpace.VMEM),
        compiler_params=pltpu.CompilerParams(vmem_limit_bytes=_VMEM_LIMIT),
    )(em, lab, mk, st, en, tr)
    return out[0, 0]


# ---------------------------------------------------------------------------
# Parameters (deterministic synthetic init)
# ---------------------------------------------------------------------------

def init_params(key, cfg):
    H, I, T = cfg["hidden"], cfg["inter"], cfg["num_labels"]
    nh = cfg["heads"]
    dh = H // nh
    keys = iter(jax.random.split(key, 256))

    def nrm(shape):
        return 0.02 * jax.random.normal(next(keys), shape)

    p = dict(hidden=H, heads=nh, num_labels=T)
    p["word_emb"] = nrm((cfg["vocab"], H))
    p["pos_emb"] = nrm((cfg["max_pos"], H))
    p["type_emb"] = nrm((cfg["type_vocab"], H))
    p["emb_ln_g"] = jnp.ones((1, H), jnp.float32)
    p["emb_ln_b"] = jnp.zeros((1, H), jnp.float32)

    layers = []
    for _ in range(cfg["layers"]):
        wq, wk, wv, wo = nrm((H, H)), nrm((H, H)), nrm((H, H)), nrm((H, H))
        layers.append(dict(
            # head-major layouts: one BlockSpec-DMA'd head slab per grid step, no in-kernel slicing
            wq3=wq.reshape(H, nh, dh).transpose(1, 0, 2).astype(jnp.bfloat16),
            wk3=wk.reshape(H, nh, dh).transpose(1, 0, 2).astype(jnp.bfloat16),
            wv3=wv.reshape(H, nh, dh).transpose(1, 0, 2).astype(jnp.bfloat16),
            bq3=jnp.zeros((nh, 1, dh), jnp.float32),
            bk3=jnp.zeros((nh, 1, dh), jnp.float32),
            bv3=jnp.zeros((nh, 1, dh), jnp.float32),
            wo3=wo.reshape(nh, dh, H).astype(jnp.bfloat16),
            bo=jnp.zeros((1, H), jnp.float32),
            ln1_g=jnp.ones((1, H), jnp.float32), ln1_b=jnp.zeros((1, H), jnp.float32),
            w1=nrm((H, I)).astype(jnp.bfloat16), b1=jnp.zeros((1, I), jnp.float32),
            w2=nrm((I, H)).astype(jnp.bfloat16), b2=jnp.zeros((1, H), jnp.float32),
            ln2_g=jnp.ones((1, H), jnp.float32), ln2_b=jnp.zeros((1, H), jnp.float32),
        ))
    p["layers"] = layers

    # Classifier pre-padded to TAG_PAD: zero weight columns + -1e9 bias for pad tags so the
    # fused last-layer kernel writes CRF-ready lane-padded logits directly.
    wc = nrm((H, T))
    p["wc_pad"] = jnp.pad(wc, ((0, 0), (0, TAG_PAD - T))).astype(jnp.bfloat16)
    p["bc_pad"] = jnp.pad(jnp.zeros((1, T), jnp.float32), ((0, 0), (0, TAG_PAD - T)),
                          constant_values=NEG)

    # CRF params: uniform(-0.1, 0.1) like torchcrf, then BIO_Tag_CRF constraints (f32).
    k0, k1, k2 = jax.random.split(next(keys), 3)
    start = jax.random.uniform(k0, (T,), minval=-0.1, maxval=0.1)
    end = jax.random.uniform(k1, (T,), minval=-0.1, maxval=0.1)
    trans = jax.random.uniform(k2, (T, T), minval=-0.1, maxval=0.1)
    nu = (T - 1) // 2
    start = start.at[nu:2 * nu].set(-10000.0)
    j_idx = jnp.arange(T)[:, None]
    i_idx = jnp.arange(T)[None, :]
    is_I = (i_idx >= nu) & (i_idx < 2 * nu)
    keep = (j_idx == i_idx) | (j_idx + nu == i_idx)
    trans = jnp.where(is_I & jnp.logical_not(keep), -10000.0, trans)
    p["crf_start"] = start.astype(jnp.float32)
    p["crf_end"] = end.astype(jnp.float32)
    p["crf_trans"] = trans.astype(jnp.float32)
    return p


# ---------------------------------------------------------------------------
# Forward pass
# ---------------------------------------------------------------------------

def encoder_forward(p, input_ids, attention_mask, token_type_ids):
    B, S = input_ids.shape
    H, nh = p["hidden"], p["heads"]

    we = p["word_emb"][input_ids]              # [B, S, H]   (XLA gather)
    te = p["type_emb"][token_type_ids]         # [B, S, H]
    pos = p["pos_emb"][:S]                     # [S, H]      (no broadcast materialization)
    x3 = embed_ln(we, te, pos, p["emb_ln_g"], p["emb_ln_b"])

    add_mask = (1.0 - attention_mask.astype(jnp.float32)) * -10000.0   # [B, S]

    n_layers = len(p["layers"])
    for li, lyr in enumerate(p["layers"]):
        cls = (p["wc_pad"], p["bc_pad"]) if li == n_layers - 1 else None
        x3 = layer_block(x3, add_mask, lyr, nh=nh, cls=cls)
    return x3                                   # last layer returns [B, S, TAG_PAD] logits


def bert_crf_forward(p, input_ids, attention_mask, token_type_ids, labels):
    logits = encoder_forward(p, input_ids, attention_mask, token_type_ids)  # [B, S, Tp]
    mask = labels != -100                                                    # [B, S]
    # Gather valid positions to the front of each row (== per-row logit[mask] + pad_sequence).
    order = jnp.argsort(jnp.logical_not(mask), axis=1, stable=True)
    g_logits = jnp.take_along_axis(logits, order[:, :, None], axis=1)
    g_labels = jnp.take_along_axis(labels, order, axis=1)
    g_mask = jnp.take_along_axis(mask, order, axis=1)
    g_labels = jnp.where(g_mask, g_labels, 0)
    g_logits = jnp.where(g_mask[:, :, None], g_logits, 0.0)
    loss = crf_nll(g_logits, g_labels.astype(jnp.int32),
                   g_mask.astype(jnp.float32),
                   p["crf_start"], p["crf_end"], p["crf_trans"])
    return (loss,)   # module is in training mode -> (loss,)


# ---------------------------------------------------------------------------
# Main
# ---------------------------------------------------------------------------

if __name__ == "__main__":
    key = jax.random.PRNGKey(0)
    cfg = dict(vocab=100, hidden=32, heads=4, layers=2, inter=64,
               max_pos=64, type_vocab=2, num_labels=5)   # num_labels odd (BIO: 2 entity types + O)
    pkey, dkey = jax.random.split(key)
    params = init_params(pkey, cfg)

    B, S = 2, 8
    k1, k2 = jax.random.split(dkey)
    input_ids = jax.random.randint(k1, (B, S), 0, cfg["vocab"], dtype=jnp.int32)
    attention_mask = jnp.array([[1, 1, 1, 1, 1, 1, 1, 1],
                                [1, 1, 1, 1, 1, 1, 0, 0]], dtype=jnp.int32)
    token_type_ids = jnp.zeros((B, S), jnp.int32)
    labels = jax.random.randint(k2, (B, S), 0, cfg["num_labels"], dtype=jnp.int32)
    labels = labels.at[:, 0].set(-100)                       # special token -> ignored
    labels = jnp.where(attention_mask == 0, -100, labels)    # padding -> ignored

    out = bert_crf_forward(params, input_ids, attention_mask, token_type_ids, labels)
    loss = jax.block_until_ready(out[0])
    assert bool(jnp.isfinite(loss))
    print("KERNEL_OK")
</pallas_src>

<mosaic_0001>
module attributes {stable_mosaic.version = 11 : i64} {
  func.func @_embed_ln_kernel(%arg0: i32, %arg1: i32, %arg2: memref<1x8x32xf32, #tpu.memory_space<vmem>>, %arg3: memref<1x8x32xf32, #tpu.memory_space<vmem>>, %arg4: memref<8x32xf32, #tpu.memory_space<vmem>>, %arg5: memref<1x32xf32, #tpu.memory_space<vmem>>, %arg6: memref<1x32xf32, #tpu.memory_space<vmem>>, %arg7: memref<1x8x32xf32, #tpu.memory_space<vmem>>) attributes {dimension_semantics = [#tpu.dimension_semantics<parallel>, #tpu.dimension_semantics<parallel>], iteration_bounds = array<i64: 2, 1>, scalar_prefetch = 0 : i64, scratch_operands = 0 : i64, tpu.core_type = #tpu.core_type<tc>, window_params = [{transform_indices = @transform_0, window_bounds = array<i64: 1, 8, 32>}, {transform_indices = @transform_1, window_bounds = array<i64: 1, 8, 32>}, {transform_indices = @transform_2, window_bounds = array<i64: 8, 32>}, {pipeline_mode = #tpu.pipeline_mode<synchronous>, transform_indices = @transform_3, window_bounds = array<i64: 1, 32>}, {pipeline_mode = #tpu.pipeline_mode<synchronous>, transform_indices = @transform_4, window_bounds = array<i64: 1, 32>}, {transform_indices = @transform_5, window_bounds = array<i64: 1, 8, 32>}]} {
    %c0 = arith.constant 0 : index
    %c0_0 = arith.constant 0 : index
    %c0_1 = arith.constant 0 : index
    %0 = vector.load %arg2[%c0, %c0_0, %c0_1] : memref<1x8x32xf32, #tpu.memory_space<vmem>>, vector<1x8x32xf32>
    %1 = vector.shape_cast %0 : vector<1x8x32xf32> to vector<8x32xf32>
    %c0_2 = arith.constant 0 : index
    %c0_3 = arith.constant 0 : index
    %c0_4 = arith.constant 0 : index
    %2 = vector.load %arg3[%c0_2, %c0_3, %c0_4] : memref<1x8x32xf32, #tpu.memory_space<vmem>>, vector<1x8x32xf32>
    %3 = vector.shape_cast %2 : vector<1x8x32xf32> to vector<8x32xf32>
    %4 = arith.addf %1, %3 : vector<8x32xf32>
    %c0_5 = arith.constant 0 : index
    %c0_6 = arith.constant 0 : index
    %5 = vector.load %arg4[%c0_5, %c0_6] : memref<8x32xf32, #tpu.memory_space<vmem>>, vector<8x32xf32>
    %6 = arith.addf %4, %5 : vector<8x32xf32>
    %c0_7 = arith.constant 0 : index
    %c0_8 = arith.constant 0 : index
    %7 = vector.load %arg5[%c0_7, %c0_8] : memref<1x32xf32, #tpu.memory_space<vmem>>, vector<1x32xf32>
    %c0_9 = arith.constant 0 : index
    %c0_10 = arith.constant 0 : index
    %8 = vector.load %arg6[%c0_9, %c0_10] : memref<1x32xf32, #tpu.memory_space<vmem>>, vector<1x32xf32>
    %cst = arith.constant dense<0.000000e+00> : vector<8xf32>
    %9 = vector.multi_reduction <add>, %6, %cst [1] : vector<8x32xf32> to vector<8xf32>
    %10 = vector.shape_cast %9 : vector<8xf32> to vector<8x1xf32>
    %cst_11 = arith.constant 3.200000e+01 : f32
    %11 = vector.broadcast %cst_11 : f32 to vector<8x1xf32>
    %12 = arith.divf %10, %11 : vector<8x1xf32>
    %13 = vector.broadcast %12 : vector<8x1xf32> to vector<8x32xf32>
    %14 = arith.subf %6, %13 : vector<8x32xf32>
    %15 = arith.mulf %14, %14 : vector<8x32xf32>
    %cst_12 = arith.constant dense<0.000000e+00> : vector<8xf32>
    %16 = vector.multi_reduction <add>, %15, %cst_12 [1] : vector<8x32xf32> to vector<8xf32>
    %17 = vector.shape_cast %16 : vector<8xf32> to vector<8x1xf32>
    %cst_13 = arith.constant 3.200000e+01 : f32
    %18 = vector.broadcast %cst_13 : f32 to vector<8x1xf32>
    %19 = arith.divf %17, %18 : vector<8x1xf32>
    %20 = vector.broadcast %12 : vector<8x1xf32> to vector<8x32xf32>
    %21 = arith.subf %6, %20 : vector<8x32xf32>
    %cst_14 = arith.constant 9.99999996E-13 : f32
    %22 = vector.broadcast %cst_14 : f32 to vector<8x1xf32>
    %23 = arith.addf %19, %22 : vector<8x1xf32>
    %24 = math.rsqrt %23 : vector<8x1xf32>
    %25 = vector.broadcast %24 : vector<8x1xf32> to vector<8x32xf32>
    %26 = arith.mulf %21, %25 : vector<8x32xf32>
    %27 = vector.broadcast %7 : vector<1x32xf32> to vector<8x32xf32>
    %28 = arith.mulf %26, %27 : vector<8x32xf32>
    %29 = vector.broadcast %8 : vector<1x32xf32> to vector<8x32xf32>
    %30 = arith.addf %28, %29 : vector<8x32xf32>
    %c0_15 = arith.constant 0 : index
    %c0_16 = arith.constant 0 : index
    %c0_17 = arith.constant 0 : index
    %31 = vector.load %arg7[%c0_15, %c0_16, %c0_17] : memref<1x8x32xf32, #tpu.memory_space<vmem>>, vector<1x8x32xf32>
    %32 = vector.shape_cast %31 : vector<1x8x32xf32> to vector<8x32xf32>
    %33 = vector.shape_cast %30 : vector<8x32xf32> to vector<1x8x32xf32>
    tpu.vector_store %arg7[%c0_15, %c0_16, %c0_17], %33 {strides = array<i32>} : memref<1x8x32xf32, #tpu.memory_space<vmem>>, vector<1x8x32xf32>,
    return
  }
  func.func @transform_0(%arg0: i32, %arg1: i32) -> (i32, i32, i32) {
    %c0_i32 = arith.constant 0 : i32
    %c0_i32_0 = arith.constant 0 : i32
    return %arg0, %arg1, %c0_i32 : i32, i32, i32
  }
  func.func @transform_1(%arg0: i32, %arg1: i32) -> (i32, i32, i32) {
    %c0_i32 = arith.constant 0 : i32
    %c0_i32_0 = arith.constant 0 : i32
    return %arg0, %arg1, %c0_i32 : i32, i32, i32
  }
  func.func @transform_2(%arg0: i32, %arg1: i32) -> (i32, i32) {
    %c0_i32 = arith.constant 0 : i32
    %c0_i32_0 = arith.constant 0 : i32
    return %arg1, %c0_i32 : i32, i32
  }
  func.func @transform_3(%arg0: i32, %arg1: i32) -> (i32, i32) {
    %c0_i32 = arith.constant 0 : i32
    %c0_i32_0 = arith.constant 0 : i32
    %c0_i32_1 = arith.constant 0 : i32
    return %c0_i32, %c0_i32_0 : i32, i32
  }
  func.func @transform_4(%arg0: i32, %arg1: i32) -> (i32, i32) {
    %c0_i32 = arith.constant 0 : i32
    %c0_i32_0 = arith.constant 0 : i32
    %c0_i32_1 = arith.constant 0 : i32
    return %c0_i32, %c0_i32_0 : i32, i32
  }
  func.func @transform_5(%arg0: i32, %arg1: i32) -> (i32, i32, i32) {
    %c0_i32 = arith.constant 0 : i32
    %c0_i32_0 = arith.constant 0 : i32
    return %arg0, %arg1, %c0_i32 : i32, i32, i32
  }
}

</mosaic_0001>

<llo_original>
// kernel: tpu_custom_call.1
$region0: #{tpu_custom_call.1}
  #allocation0 [shape = 'u32[]', space=smem, size = 0x4, offset = 0x4, fixed_abs, tag = 'smem constant byte address 0x4 - core index']
  #allocation1 [shape = 'u32[144,128]{1,0:T(1,128)}', space=vmem, size = 0x12000, scoped, tag = 'internal scratch']
  %s0 = inlined_call_operand.hbm [shape: f32[2,8,32], index: 0, kind: input, shape index: {}]
  %s1 = inlined_call_operand.hbm [shape: f32[2,8,32], index: 1, kind: input, shape index: {}]
  %s2 = inlined_call_operand.hbm [shape: f32[8,32], index: 2, kind: input, shape index: {}]
  %s3 = inlined_call_operand.vmem [shape: f32[1,32], index: 3, kind: input, shape index: {}]
  %s4 = inlined_call_operand.vmem [shape: f32[1,32], index: 4, kind: input, shape index: {}]
  %s5 = inlined_call_operand.hbm [shape: f32[2,8,32], index: 5, kind: output, shape index: {}]
  %s6 = sld [smem:[#allocation0]]
  $region65: #{tpu_custom_call.1} parent=0
    _
  %s8 = ssub.s32 1, %s6
  %s9 = scalar_select 0, %s8, %s6
  $region1: #{tpu_custom_call.1} parent=0
    #allocation2 [shape = 'u8[8192]{0}', space=vmem, size = 0x2000, scoped, tag = 'input window, operand 0']
    #allocation3 [shape = 's32[2]{0}', space=sflag, size = 0x8, scoped, tag = 'scoped memory for tpu_custom_call.1']
    #allocation4 [shape = 's32[2]{0}', space=sflag, size = 0x8, scoped, tag = 'scoped memory for tpu_custom_call.1']
    #allocation5 [shape = 'u8[8192]{0}', space=vmem, size = 0x2000, scoped, tag = 'input window, operand 1']
    #allocation6 [shape = 's32[2]{0}', space=sflag, size = 0x8, scoped, tag = 'scoped memory for tpu_custom_call.1']
    #allocation7 [shape = 'u8[4096]{0}', space=vmem, size = 0x1000, scoped, tag = 'input window, operand 2, single buffered']
    #allocation8 [shape = 'u8[8192]{0}', space=vmem, size = 0x2000, scoped, tag = 'output window, operand 0']
    %10 = vsyncpa [#allocation3], 0
    %s11 = scalar_lea.sflag [#allocation3], 1
    %12 = vsyncpa %s11, 0
    %13 = vsyncpa [#allocation6], 0
    %s14 = scalar_lea.sflag [#allocation6], 1
    %15 = vsyncpa %s14, 0
    %16 = vsyncpa [#allocation4], 0
    %s17 = scalar_lea.sflag [#allocation4], 1
    %18 = vsyncpa %s17, 0
    loop: start=0, step=1, limit=4
    $region2: #{tpu_custom_call.1} parent=1 // loop_pre_header
      _
    $region3: #{tpu_custom_call.1} parent=1 // loop_header
      %s20 = sphi 0, %s24
      %p21 = scmp.ge.s32.totalorder %s20, 4
      %s27 = sphi 0, %s39
      %s28 = sphi 0, %s35
      %s29 = sphi 0, %s27
      %s30 = sphi 0, %s28
      %s31 = sphi 0, %s29
      %s32 = sphi 0, %s30
      %s44 = sphi 0, %s46
      %s47 = sphi 0, %s44
      %s48 = sphi 0, %s47
      %s64 = sphi 0, %s48
      %s72 = sphi 0, %s74
      %s75 = sphi 0, %s72
      %s76 = sphi 0, %s75
      %s92 = sphi 0, %s76
      %s98 = sphi 0, %s100
      %s101 = sphi 0, %s98
      %s102 = sphi 0, %s101
      %s118 = sphi 0, %s102
      %s122 = sphi 0, %s122
      %s124 = sphi 0, %s122
      %s125 = sphi 0, %s124
      %s139 = sphi 0, %s125
      %s143 = sphi 0, %s143
      %s145 = sphi 0, %s143
      %s146 = sphi 0, %s145
      %s160 = sphi 0, %s146
      %s168 = sphi 0, %s170
      %s171 = sphi 0, %s168
      %s172 = sphi 0, %s171
      %s188 = sphi 0, %s172
    $region4: #{tpu_custom_call.1} parent=1 // loop_header_branch
      %23 = sbr.rel (%p21) target = $region8
    $region5: #{tpu_custom_call.1} parent=1 // loop_body
      %s25 = ssub.s32 %s20, 1
      %s26 = ssub.s32 %s20, 2
      %s33 = sadd.s32 1, %s28
      %p34 = scmp.ge.s32.totalorder %s33, 1
      %s35 = scalar_select %p34, 0, %s33
      %s36 = sadd.s32 1, %s27
      %s37 = scalar_select %p34, %s36, %s27
      %p38 = scmp.ge.s32.totalorder %s37, 2
      %s39 = scalar_select %p38, 0, %s37
      %s40 = ssub.s32 %s27, %s39
      %s41 = ssub.s32 %s28, %s35
      %s42 = sor.u32 %s40, %s41
      %p43 = scmp.eq.s32.totalorder %s42, 0
      %s45 = sadd.s32 %s44, 1
      %s46 = scalar_select %p43, %s44, %s45
      %p49 = pneg %p43
      %p50 = scmp.eq.s32.totalorder %s20, 1
      %p51 = por %p49, %p50
      %p52 = scmp.ne.s32.totalorder %s44, %s47
      %p53 = scmp.eq.s32.totalorder %s20, 0
      %p54 = por %p52, %p53
      %p55 = scmp.ne.s32.totalorder %s44, %s47
      %p56 = scmp.eq.s32.totalorder %s25, 1
      %p57 = por %p55, %p56
      %p58 = scmp.ne.s32.totalorder %s47, %s48
      %p59 = scmp.eq.s32.totalorder %s25, 0
      %p60 = por %p58, %p59
      %p61 = scmp.ne.s32.totalorder %s47, %s48
      %p62 = scmp.eq.s32.totalorder %s26, 1
      %p63 = por %p61, %p62
      %p65 = scmp.ne.s32.totalorder %s48, %s64
      %p66 = scmp.eq.s32.totalorder %s26, 0
      %p67 = por %p65, %p66
      %s68 = ssub.s32 %s27, %s39
      %s69 = ssub.s32 %s28, %s35
      %s70 = sor.u32 %s68, %s69
      %p71 = scmp.eq.s32.totalorder %s70, 0
      %s73 = sadd.s32 %s72, 1
      %s74 = scalar_select %p71, %s72, %s73
      %p77 = pneg %p71
      %p78 = scmp.eq.s32.totalorder %s20, 1
      %p79 = por %p77, %p78
      %p80 = scmp.ne.s32.totalorder %s72, %s75
      %p81 = scmp.eq.s32.totalorder %s20, 0
      %p82 = por %p80, %p81
      %p83 = scmp.ne.s32.totalorder %s72, %s75
      %p84 = scmp.eq.s32.totalorder %s25, 1
      %p85 = por %p83, %p84
      %p86 = scmp.ne.s32.totalorder %s75, %s76
      %p87 = scmp.eq.s32.totalorder %s25, 0
      %p88 = por %p86, %p87
      %p89 = scmp.ne.s32.totalorder %s75, %s76
      %p90 = scmp.eq.s32.totalorder %s26, 1
      %p91 = por %p89, %p90
      %p93 = scmp.ne.s32.totalorder %s76, %s92
      %p94 = scmp.eq.s32.totalorder %s26, 0
      %p95 = por %p93, %p94
      %s96 = ssub.s32 %s28, %s35
      %p97 = scmp.eq.s32.totalorder %s96, 0
      %s99 = sadd.s32 %s98, 1
      %s100 = scalar_select %p97, %s98, %s99
      %p103 = pneg %p97
      %p104 = scmp.eq.s32.totalorder %s20, 1
      %p105 = por %p103, %p104
      %p106 = scmp.ne.s32.totalorder %s98, %s101
      %p107 = scmp.eq.s32.totalorder %s20, 0
      %p108 = por %p106, %p107
      %p109 = scmp.ne.s32.totalorder %s98, %s101
      %p110 = scmp.eq.s32.totalorder %s25, 1
      %p111 = por %p109, %p110
      %p112 = scmp.ne.s32.totalorder %s101, %s102
      %p113 = scmp.eq.s32.totalorder %s25, 0
      %p114 = por %p112, %p113
      %p115 = scmp.ne.s32.totalorder %s101, %s102
      %p116 = scmp.eq.s32.totalorder %s26, 1
      %p117 = por %p115, %p116
      %p119 = scmp.ne.s32.totalorder %s102, %s118
      %p120 = scmp.eq.s32.totalorder %s26, 0
      %p121 = por %p119, %p120
      %s123 = sadd.s32 %s122, 1
      %p126 = scmp.eq.s32.totalorder %s20, 1
      %p127 = scmp.ne.s32.totalorder %s122, %s124
      %p128 = scmp.eq.s32.totalorder %s20, 0
      %p129 = por %p127, %p128
      %p130 = scmp.ne.s32.totalorder %s122, %s124
      %p131 = scmp.eq.s32.totalorder %s25, 1
      %p132 = por %p130, %p131
      %p133 = scmp.ne.s32.totalorder %s124, %s125
      %p134 = scmp.eq.s32.totalorder %s25, 0
      %p135 = por %p133, %p134
      %p136 = scmp.ne.s32.totalorder %s124, %s125
      %p137 = scmp.eq.s32.totalorder %s26, 1
      %p138 = por %p136, %p137
      %p140 = scmp.ne.s32.totalorder %s125, %s139
      %p141 = scmp.eq.s32.totalorder %s26, 0
      %p142 = por %p140, %p141
      %s144 = sadd.s32 %s143, 1
      %p147 = scmp.eq.s32.totalorder %s20, 1
      %p148 = scmp.ne.s32.totalorder %s143, %s145
      %p149 = scmp.eq.s32.totalorder %s20, 0
      %p150 = por %p148, %p149
      %p151 = scmp.ne.s32.totalorder %s143, %s145
      %p152 = scmp.eq.s32.totalorder %s25, 1
      %p153 = por %p151, %p152
      %p154 = scmp.ne.s32.totalorder %s145, %s146
      %p155 = scmp.eq.s32.totalorder %s25, 0
      %p156 = por %p154, %p155
      %p157 = scmp.ne.s32.totalorder %s145, %s146
      %p158 = scmp.eq.s32.totalorder %s26, 1
      %p159 = por %p157, %p158
      %p161 = scmp.ne.s32.totalorder %s146, %s160
      %p162 = scmp.eq.s32.totalorder %s26, 0
      %p163 = por %p161, %p162
      %s164 = ssub.s32 %s27, %s39
      %s165 = ssub.s32 %s28, %s35
      %s166 = sor.u32 %s164, %s165
      %p167 = scmp.eq.s32.totalorder %s166, 0
      %s169 = sadd.s32 %s168, 1
      %s170 = scalar_select %p167, %s168, %s169
      %p173 = pneg %p167
      %p174 = scmp.eq.s32.totalorder %s20, 1
      %p175 = por %p173, %p174
      %p176 = scmp.ne.s32.totalorder %s168, %s171
      %p177 = scmp.eq.s32.totalorder %s20, 0
      %p178 = por %p176, %p177
      %p179 = scmp.ne.s32.totalorder %s168, %s171
      %p180 = scmp.eq.s32.totalorder %s25, 1
      %p181 = por %p179, %p180
      %p182 = scmp.ne.s32.totalorder %s171, %s172
      %p183 = scmp.eq.s32.totalorder %s25, 0
      %p184 = por %p182, %p183
      %p185 = scmp.ne.s32.totalorder %s171, %s172
      %p186 = scmp.eq.s32.totalorder %s26, 1
      %p187 = por %p185, %p186
      %p189 = scmp.ne.s32.totalorder %s172, %s188
      %p190 = scmp.eq.s32.totalorder %s26, 0
      %p191 = por %p189, %p190
      %p192 = scmp.le.s32.totalorder 1, %s20
      %p193 = scmp.lt.s32.totalorder %s20, 3
      %p194 = pnand %p192, %p193
      %p195 = pneg %p194
      // Predicated region
      $region9: #{tpu_custom_call.1} parent=5 // pred_check
        _
      $region10: #{tpu_custom_call.1} parent=5 // pred_check_branch
        %197 = sbr.rel (%p194) target = $region12
      $region11: #{tpu_custom_call.1} parent=5 // pred_region
        %s198 = ssub.s32 %s20, 1
        // Predicated region
        $region13: #{tpu_custom_call.1} parent=11 // pred_check
          %p199 = pneg %p114
        $region14: #{tpu_custom_call.1} parent=11 // pred_check_branch
          %201 = sbr.rel (%p199) target = $region16
        $region15: #{tpu_custom_call.1} parent=11 // pred_region
          %s203 = ssub.s32 128, 128
          %204 = vsyncadd [#allocation6], %s203
          %s205 = smul.addr %s30, 128
          %s206 = scalar_lea.hbm %s2, %s205
          %s208 = sshll.u32 [#allocation7], 4
          %s209 = int_to_ptr.vmem [resolvable:$true] %s208
          %211 = dma.hbm_to_vmem [thread:$0]  %s206, 128, %s209, [#allocation6]
        $region16: #{tpu_custom_call.1} parent=11 // pred_fallthru
          _
        // Predicated region
        $region17: #{tpu_custom_call.1} parent=11 // pred_check
          %p212 = pneg %p135
        $region18: #{tpu_custom_call.1} parent=11 // pred_check_branch
          %214 = sbr.rel (%p212) target = $region20
        $region19: #{tpu_custom_call.1} parent=11 // pred_region
          _
        $region20: #{tpu_custom_call.1} parent=11 // pred_fallthru
          _
        // Predicated region
        $region21: #{tpu_custom_call.1} parent=11 // pred_check
          %p215 = pneg %p156
        $region22: #{tpu_custom_call.1} parent=11 // pred_check_branch
          %217 = sbr.rel (%p215) target = $region24
        $region23: #{tpu_custom_call.1} parent=11 // pred_region
          _
        $region24: #{tpu_custom_call.1} parent=11 // pred_fallthru
          _
      $region12: #{tpu_custom_call.1} parent=5 // pred_fallthru
        _
      %p218 = scmp.lt.s32.totalorder %s20, 2
      // Predicated region
      $region25: #{tpu_custom_call.1} parent=5 // pred_check
        %p219 = pneg %p218
      $region26: #{tpu_custom_call.1} parent=5 // pred_check_branch
        %221 = sbr.rel (%p219) target = $region28
      $region27: #{tpu_custom_call.1} parent=5 // pred_region
        // Predicated region
        $region29: #{tpu_custom_call.1} parent=27 // pred_check
          %p222 = pneg %p54
        $region30: #{tpu_custom_call.1} parent=27 // pred_check_branch
          %224 = sbr.rel (%p222) target = $region32
        $region31: #{tpu_custom_call.1} parent=27 // pred_region
          %s225 = sand.u32 %s44, 1
          %s226 = scalar_lea.sflag [#allocation3], %s225
          %s227 = sand.u32 %s44, 1
          %s228 = smul.addr %s227, 8
          %s229 = scalar_lea.vmem [#allocation2], %s228
          %s231 = ssub.s32 128, 128
          %232 = vsyncadd %s226, %s231
          %s233 = sadd.s32 %s28, %s27
          %s234 = smul.addr %s233, 128
          %s235 = scalar_lea.hbm %s0, %s234
          %s237 = sshll.u32 %s229, 4
          %s238 = int_to_ptr.vmem [resolvable:$true] %s237
          %240 = dma.hbm_to_vmem [thread:$0]  %s235, 128, %s238, %s226
        $region32: #{tpu_custom_call.1} parent=27 // pred_fallthru
          _
        // Predicated region
        $region33: #{tpu_custom_call.1} parent=27 // pred_check
          %p241 = pneg %p82
        $region34: #{tpu_custom_call.1} parent=27 // pred_check_branch
          %243 = sbr.rel (%p241) target = $region36
        $region35: #{tpu_custom_call.1} parent=27 // pred_region
          %s244 = sand.u32 %s20, 1
          %s245 = scalar_lea.sflag [#allocation6], %s244
          %s246 = sand.u32 %s72, 1
          %s247 = smul.addr %s246, 8
          %s248 = scalar_lea.vmem [#allocation5], %s247
          %s250 = ssub.s32 128, 128
          %251 = vsyncadd %s245, %s250
          %s252 = sadd.s32 %s28, %s27
          %s253 = smul.addr %s252, 128
          %s254 = scalar_lea.hbm %s1, %s253
          %s256 = sshll.u32 %s248, 4
          %s257 = int_to_ptr.vmem [resolvable:$true] %s256
          %259 = dma.hbm_to_vmem [thread:$0]  %s254, 128, %s257, %s245
        $region36: #{tpu_custom_call.1} parent=27 // pred_fallthru
          _
      $region28: #{tpu_custom_call.1} parent=5 // pred_fallthru
        _
      %p260 = scmp.le.s32.totalorder 1, %s20
      %p261 = scmp.lt.s32.totalorder %s20, 3
      %p262 = pnand %p260, %p261
      %p263 = pneg %p262
      // Predicated region
      $region37: #{tpu_custom_call.1} parent=5 // pred_check
        _
      $region38: #{tpu_custom_call.1} parent=5 // pred_check_branch
        %265 = sbr.rel (%p262) target = $region40
      $region39: #{tpu_custom_call.1} parent=5 // pred_region
        %s266 = ssub.s32 %s20, 1
        %s267 = sand.u32 %s47, 1
        %s268 = scalar_lea.sflag [#allocation3], %s267
        %s269 = sand.u32 %s47, 1
        %s270 = smul.addr %s269, 8
        %s271 = scalar_lea.vmem [#allocation2], %s270
        // Predicated region
        $region41: #{tpu_custom_call.1} parent=39 // pred_check
          %p272 = pneg %p60
        $region42: #{tpu_custom_call.1} parent=39 // pred_check_branch
          %274 = sbr.rel (%p272) target = $region44
        $region43: #{tpu_custom_call.1} parent=39 // pred_region
          %275 = dma.done %s268, 128
        $region44: #{tpu_custom_call.1} parent=39 // pred_fallthru
          _
        %s276 = sand.u32 %s25, 1
        %s277 = scalar_lea.sflag [#allocation6], %s276
        %s278 = sand.u32 %s75, 1
        %s279 = smul.addr %s278, 8
        %s280 = scalar_lea.vmem [#allocation5], %s279
        // Predicated region
        $region45: #{tpu_custom_call.1} parent=39 // pred_check
          %p281 = pneg %p88
        $region46: #{tpu_custom_call.1} parent=39 // pred_check_branch
          %283 = sbr.rel (%p281) target = $region48
        $region47: #{tpu_custom_call.1} parent=39 // pred_region
          %284 = dma.done %s277, 128
        $region48: #{tpu_custom_call.1} parent=39 // pred_fallthru
          _
        // Predicated region
        $region49: #{tpu_custom_call.1} parent=39 // pred_check
          %p285 = pneg %p114
        $region50: #{tpu_custom_call.1} parent=39 // pred_check_branch
          %287 = sbr.rel (%p285) target = $region52
        $region51: #{tpu_custom_call.1} parent=39 // pred_region
          %288 = dma.done [#allocation6], 128
        $region52: #{tpu_custom_call.1} parent=39 // pred_fallthru
          _
        %s289 = sand.u32 %s47, 1
        %s290 = scalar_lea.sflag [#allocation3], %s289
        %s291 = sand.u32 %s47, 1
        %s292 = smul.addr %s291, 8
        %s293 = scalar_lea.vmem [#allocation2], %s292
        %p294 = pneg %p60
        %p295 = pneg %p57
        %s296 = sand.u32 %s25, 1
        %s297 = scalar_lea.sflag [#allocation6], %s296
        %s298 = sand.u32 %s75, 1
        %s299 = smul.addr %s298, 8
        %s300 = scalar_lea.vmem [#allocation5], %s299
        %p301 = pneg %p88
        %p302 = pneg %p85
        %p303 = pneg %p114
        %p304 = pneg %p111
        %p305 = pneg %p135
        %p306 = pneg %p132
        %p307 = pneg %p156
        %p308 = pneg %p153
        %p309 = pneg %p184
        %p310 = pneg %p181
        %s311 = sand.u32 %s171, 1
        %s312 = scalar_lea.sflag [#allocation4], %s311
        %s313 = sand.u32 %s171, 1
        %s314 = smul.addr %s313, 8
        %s315 = scalar_lea.vmem [#allocation8], %s314
        %v316 = vld [vmem:[%s271] sm:$0xff]
        %v317 = vld [vmem:[%s280] sm:$0xff]
        %v318 = vadd.f32 %v316, %v317
        %v319 = vld [vmem:[#allocation7] sm:$0xff]
        %v320 = vadd.f32 %v318, %v319
        %v321 = vld [vmem:[%s3] sm:$0x1]
        %v322 = vld [vmem:[%s4] sm:$0x1]
        %vm323 = vcmask 261120
        %v324 = vsel %vm323, %v320, 0.0
        %325 = vadd.xlane.f32.xlu0 %v324
        %v326 = vpop.xlane.xlu0 %325
        %v327 = vrcp.pop 32.0
        %v328 = vmul.f32 %v326, %v327
        %v329 = vsub.f32 %v320, %v328
        %v330 = vmul.f32 %v329, %v329
        %v331 = vsel %vm323, %v330, 0.0
        %332 = vadd.xlane.f32.xlu0 %v331
        %v333 = vpop.xlane.xlu0 %332
        %v334 = vmul.f32 %v333, %v327
        %v335 = vadd.f32 %v334, 1e-12
        %v336 = vrsqrt.pop %v335
        %v337 = vmul.f32 %v329, %v336
        %v339 = vlaneseq
        %v340 = vshrl.u32 %v339, 7
        %v341 = vsub.s32 0, %v340
        %v342 = vrot.slane %v321, %v341
        %v344 = vmul.f32 %v337, %v342
        %v346 = vlaneseq
        %v347 = vshrl.u32 %v346, 7
        %v348 = vsub.s32 0, %v347
        %v349 = vrot.slane %v322, %v348
        %v351 = vadd.f32 %v344, %v349
        %352 = vst.msk [vmem:[%s315] sm:$0xff] %vm323, %v351
        %s353 = sand.u32 %s171, 1
        %s354 = scalar_lea.sflag [#allocation4], %s353
        %s355 = sand.u32 %s171, 1
        %s356 = smul.addr %s355, 8
        %s357 = scalar_lea.vmem [#allocation8], %s356
        // Predicated region
        $region53: #{tpu_custom_call.1} parent=39 // pred_check
          %p358 = pneg %p181
        $region54: #{tpu_custom_call.1} parent=39 // pred_check_branch
          %360 = sbr.rel (%p358) target = $region56
        $region55: #{tpu_custom_call.1} parent=39 // pred_region
          %s362 = ssub.s32 128, 128
          %363 = vsyncadd %s354, %s362
          %s364 = sadd.s32 %s30, %s29
          %s365 = smul.addr %s364, 128
          %s366 = scalar_lea.hbm %s5, %s365
          %s368 = sshll.u32 %s357, 4
          %s369 = int_to_ptr.vmem [resolvable:$true] %s368
          %371 = dma.vmem_to_hbm [thread:$0]  %s369, 128, %s366, %s354
        $region56: #{tpu_custom_call.1} parent=39 // pred_fallthru
          _
      $region40: #{tpu_custom_call.1} parent=5 // pred_fallthru
        _
      %p372 = scmp.le.s32.totalorder 2, %s20
      // Predicated region
      $region57: #{tpu_custom_call.1} parent=5 // pred_check
        %p373 = pneg %p372
      $region58: #{tpu_custom_call.1} parent=5 // pred_check_branch
        %375 = sbr.rel (%p373) target = $region60
      $region59: #{tpu_custom_call.1} parent=5 // pred_region
        %s376 = ssub.s32 %s20, 2
        // Predicated region
        $region61: #{tpu_custom_call.1} parent=59 // pred_check
          %p377 = pneg %p187
        $region62: #{tpu_custom_call.1} parent=59 // pred_check_branch
          %379 = sbr.rel (%p377) target = $region64
        $region63: #{tpu_custom_call.1} parent=59 // pred_region
          %s380 = sand.u32 %s172, 1
          %s381 = scalar_lea.sflag [#allocation4], %s380
          %s382 = sand.u32 %s172, 1
          %s383 = smul.addr %s382, 8
          %s384 = scalar_lea.vmem [#allocation8], %s383
          %385 = dma.done %s381, 128
        $region64: #{tpu_custom_call.1} parent=59 // pred_fallthru
          _
      $region60: #{tpu_custom_call.1} parent=5 // pred_fallthru
        _
    $region6: #{tpu_custom_call.1} parent=1 // loop_footer
      %s24 = sadd.s32 1, %s20
    $region7: #{tpu_custom_call.1} parent=1 // loop_footer_branch
      %19 = sbr.rel target = $region3
    $region8: #{tpu_custom_call.1} parent=1 // loop_exit
      _
    %386 = vsyncpa [#allocation3], 1
    %s387 = scalar_lea.sflag [#allocation3], 1
    %388 = vsyncpa %s387, 1
    %389 = vsyncpa [#allocation6], 1
    %s390 = scalar_lea.sflag [#allocation6], 1
    %391 = vsyncpa %s390, 1
    %392 = vsyncpa [#allocation4], 1
    %s393 = scalar_lea.sflag [#allocation4], 1
    %394 = vsyncpa %s393, 1

</llo_original>
